<compile_context>
chip_gen: v5e
topology: v5e:2x2
jax: 0.10.0
libtpu: 0.0.40
codegen_flags: <defaults>
</compile_context>

<pallas_src>
import jax
import jax.numpy as jnp
from jax.experimental import pallas as pl
from jax.experimental.pallas import tpu as pltpu

_LANES = 128                      # vreg lane width
_TR_ALIGN = 32                    # row-tile alignment (covers f32/bf16/i8 sublane packing)
_MAX_ROWS_SINGLE_BLOCK = 2048     # <= 1 MiB/array f32 -> one full-array block, grid=(1,)
_MAX_ROWS_PER_TILE = 4096         # 2 MiB per f32 buffer per block on the tiled path
_MAX_RAGGED_SINGLE_BLOCK = 32768  # N % 128 != 0 handled as a (1, N) full block up to here


def _svf_kernel(sv_ref, ev_ref, out_ref):
    # modified_singular_values = singular_values * expert_vector
    out_ref[...] = (sv_ref[...] * ev_ref[...]).astype(out_ref.dtype)


def _round_up(x: int, m: int) -> int:
    return ((x + m - 1) // m) * m


def _svf_call(sv2d, ev2d, block_rows, lanes, out_dtype, alias_input):
    rows = sv2d.shape[0]
    grid = (pl.cdiv(rows, block_rows),)
    kwargs = {}
    if alias_input:
        # Donate the singular-values buffer when dtypes match (output reuses it).
        kwargs["input_output_aliases"] = {0: 0}
    return pl.pallas_call(
        _svf_kernel,
        out_shape=jax.ShapeDtypeStruct((rows, lanes), out_dtype),
        grid=grid,
        in_specs=[
            pl.BlockSpec((block_rows, lanes), lambda i: (i, 0)),
            pl.BlockSpec((block_rows, lanes), lambda i: (i, 0)),
        ],
        out_specs=pl.BlockSpec((block_rows, lanes), lambda i: (i, 0)),
        compiler_params=pltpu.CompilerParams(
            # Independent tiles -> shard across TensorCores on megacore chips.
            dimension_semantics=("parallel",),
        ),
        **kwargs,
    )(sv2d, ev2d)


def svf_adapter_forward(singular_values: jax.Array, expert_vector: jax.Array) -> jax.Array:
    """Apply the SVF expert vector to the singular values via a Pallas kernel.

    Args:
      singular_values: (N,) float array.
      expert_vector:   (N,) float array (the learned SVF parameter).

    Returns:
      (N,) array = singular_values * expert_vector (in the promoted dtype).
    """
    assert singular_values.shape == expert_vector.shape, (
        singular_values.shape, expert_vector.shape)
    (n,) = singular_values.shape
    out_dtype = jnp.result_type(singular_values.dtype, expert_vector.dtype)
    if n == 0:
        return jnp.zeros((0,), out_dtype)
    alias = out_dtype == singular_values.dtype

    if n % _LANES == 0:
        # Free metadata reshape to a lane-dense (rows, 128) slab.
        rows = n // _LANES
        sv2d = singular_values.reshape(rows, _LANES)
        ev2d = expert_vector.reshape(rows, _LANES)
        if rows <= _MAX_ROWS_SINGLE_BLOCK:
            # One full-array block: no padding, no masking, single launch.
            out2d = _svf_call(sv2d, ev2d, rows, _LANES, out_dtype, alias)
        else:
            # Large / batched path: balanced tiles, >= 2 blocks (v7x dual-TC).
            num_blocks = max(2, pl.cdiv(rows, _MAX_ROWS_PER_TILE))
            tr = _round_up(pl.cdiv(rows, num_blocks), _TR_ALIGN)
            out2d = _svf_call(sv2d, ev2d, tr, _LANES, out_dtype, alias)
        return out2d.reshape(n)

    if n <= _MAX_RAGGED_SINGLE_BLOCK:
        # Ragged small/medium N: (1, N) metadata reshape, one full-array block
        # (block == full array dims so the (8,128) rule does not apply).
        out2d = _svf_call(singular_values.reshape(1, n),
                          expert_vector.reshape(1, n),
                          1, n, out_dtype, alias)
        return out2d.reshape(n)

    # Large, lane-ragged N: pad to a lane multiple (<= 127 extra elements,
    # negligible at this size), stream balanced tiles, slice the tail off.
    n_pad = _round_up(n, _LANES)
    sv_p = jnp.pad(singular_values, (0, n_pad - n))
    ev_p = jnp.pad(expert_vector, (0, n_pad - n))
    rows = n_pad // _LANES
    num_blocks = max(2, pl.cdiv(rows, _MAX_ROWS_PER_TILE))
    tr = _round_up(pl.cdiv(rows, num_blocks), _TR_ALIGN)
    out2d = _svf_call(sv_p.reshape(rows, _LANES), ev_p.reshape(rows, _LANES),
                      tr, _LANES, out_dtype, alias)
    return out2d.reshape(n_pad)[:n]


if __name__ == "__main__":
    key = jax.random.PRNGKey(0)
    k1, k2, k3, k4 = jax.random.split(key, 4)

    # 1) Rank-256 singular-value vector with the default ones expert vector
    #    (matches nn.Parameter(torch.ones_like(...)) init).  Lane-aligned
    #    single-full-block path.
    N = 256
    sv = jax.random.uniform(k1, (N,), jnp.float32, minval=0.0, maxval=10.0)
    ev = jnp.ones((N,), jnp.float32)
    ref = sv * ev
    out = jax.block_until_ready(svf_adapter_forward(sv, ev))
    assert out.shape == (N,) and out.dtype == ref.dtype
    assert jnp.allclose(out, ref, atol=1e-6, rtol=1e-6)

    # 2) N not a multiple of 128 + non-trivial expert vector: (1, N)
    #    full-block path with no padding / slicing.
    N2 = 300
    sv2 = jax.random.uniform(k2, (N2,), jnp.float32, minval=0.0, maxval=5.0)
    ev2 = 1.0 + 0.1 * jax.random.normal(k3, (N2,), jnp.float32)
    ref2 = sv2 * ev2
    out2 = jax.block_until_ready(svf_adapter_forward(sv2, ev2))
    assert out2.shape == (N2,)
    assert jnp.allclose(out2, ref2, atol=1e-6, rtol=1e-6)

    # 3) Mixed dtype (bf16 singular values, f32 expert vector) -> promoted f32.
    N3 = 128
    sv3 = jax.random.uniform(k4, (N3,), jnp.float32).astype(jnp.bfloat16)
    ev3 = 1.0 + 0.05 * jax.random.normal(k2, (N3,), jnp.float32)
    ref3 = sv3.astype(jnp.float32) * ev3
    out3 = jax.block_until_ready(svf_adapter_forward(sv3, ev3))
    assert out3.dtype == jnp.float32
    assert jnp.allclose(out3, ref3, atol=1e-6, rtol=1e-6)

    # 4) Large, lane-ragged input (batched-adapter scale): exercises the
    #    balanced tiled path (>= 2 parallel blocks) plus the pad/slice fallback.
    N4 = 300_000
    sv4 = jax.random.uniform(k3, (N4,), jnp.float32)
    ev4 = 1.0 + 0.01 * jax.random.normal(k4, (N4,), jnp.float32)
    ref4 = sv4 * ev4
    out4 = jax.block_until_ready(svf_adapter_forward(sv4, ev4))
    assert out4.shape == (N4,)
    assert jnp.allclose(out4, ref4, atol=1e-6, rtol=1e-6)

    print("KERNEL_OK")
</pallas_src>

<mosaic_0001>
module attributes {stable_mosaic.version = 11 : i64} {
  func.func @_svf_kernel(%arg0: i32, %arg1: memref<2x128xf32, #tpu.memory_space<vmem>>, %arg2: memref<2x128xf32, #tpu.memory_space<vmem>>, %arg3: memref<2x128xf32, #tpu.memory_space<vmem>>) attributes {dimension_semantics = [#tpu.dimension_semantics<parallel>], iteration_bounds = array<i64: 1>, scalar_prefetch = 0 : i64, scratch_operands = 0 : i64, tpu.core_type = #tpu.core_type<tc>, window_params = [{transform_indices = @transform_0, window_bounds = array<i64: 2, 128>}, {transform_indices = @transform_1, window_bounds = array<i64: 2, 128>}, {transform_indices = @transform_2, window_bounds = array<i64: 2, 128>}]} {
    %c0 = arith.constant 0 : index
    %c0_0 = arith.constant 0 : index
    %0 = vector.load %arg1[%c0, %c0_0] : memref<2x128xf32, #tpu.memory_space<vmem>>, vector<2x128xf32>
    %c0_1 = arith.constant 0 : index
    %c0_2 = arith.constant 0 : index
    %1 = vector.load %arg2[%c0_1, %c0_2] : memref<2x128xf32, #tpu.memory_space<vmem>>, vector<2x128xf32>
    %2 = arith.mulf %0, %1 : vector<2x128xf32>
    %c0_3 = arith.constant 0 : index
    %c0_4 = arith.constant 0 : index
    %3 = vector.load %arg3[%c0_3, %c0_4] : memref<2x128xf32, #tpu.memory_space<vmem>>, vector<2x128xf32>
    tpu.vector_store %arg3[%c0_3, %c0_4], %2 {strides = array<i32>} : memref<2x128xf32, #tpu.memory_space<vmem>>, vector<2x128xf32>,
    return
  }
  func.func @transform_0(%arg0: i32) -> (i32, i32) {
    %c0_i32 = arith.constant 0 : i32
    %c0_i32_0 = arith.constant 0 : i32
    return %arg0, %c0_i32 : i32, i32
  }
  func.func @transform_1(%arg0: i32) -> (i32, i32) {
    %c0_i32 = arith.constant 0 : i32
    %c0_i32_0 = arith.constant 0 : i32
    return %arg0, %c0_i32 : i32, i32
  }
  func.func @transform_2(%arg0: i32) -> (i32, i32) {
    %c0_i32 = arith.constant 0 : i32
    %c0_i32_0 = arith.constant 0 : i32
    return %arg0, %c0_i32 : i32, i32
  }
}

</mosaic_0001>

<llo_original>
// kernel: tpu_custom_call.1
$region0: #{tpu_custom_call.1}
  #allocation0 [shape = 'u32[]', space=smem, size = 0x4, offset = 0x4, fixed_abs, tag = 'smem constant byte address 0x4 - core index']
  #allocation1 [shape = 'u32[72,128]{1,0:T(1,128)}', space=vmem, size = 0x9000, scoped, tag = 'internal scratch']
  %s0 = inlined_call_operand.hbm [shape: f32[2,128], index: 0, kind: input, shape index: {}, may-alias: {0,2}]
  %s1 = inlined_call_operand.vmem [shape: f32[2,128], index: 1, kind: input, shape index: {}]
  %s2 = inlined_call_operand.hbm [shape: f32[2,128], index: 2, kind: output, shape index: {}, may-alias: {0,2}]
  %s3 = sld [smem:[#allocation0]]
  $region22: #{tpu_custom_call.1} parent=0
    _
  %s5 = ssub.s32 1, %s3
  %s6 = scalar_select 0, %s5, %s3
  $region1: #{tpu_custom_call.1} parent=0
    #allocation2 [shape = 'u8[1024]{0}', space=vmem, size = 0x400, scoped, tag = 'input window, operand 0, single buffered']
    #allocation3 [shape = 's32[1]{0}', space=sflag, size = 0x4, scoped, tag = 'scoped memory for tpu_custom_call.1']
    #allocation4 [shape = 's32[1]{0}', space=sflag, size = 0x4, scoped, tag = 'scoped memory for tpu_custom_call.1']
    #allocation5 [shape = 'u8[1024]{0}', space=vmem, size = 0x400, scoped, tag = 'output window, operand 0, single buffered']
    %7 = vsyncpa [#allocation3], 0
    %8 = vsyncpa [#allocation4], 0
    // Predicated region
    $region2: #{tpu_custom_call.1} parent=1 // pred_check
      _
    $region3: #{tpu_custom_call.1} parent=1 // pred_check_branch
      %10 = sbr.rel (0) target = $region5
    $region4: #{tpu_custom_call.1} parent=1 // pred_region
      %12 = vsyncadd [#allocation3], 0
      %s14 = sshll.u32 %s0, 4
      %s15 = int_to_ptr.hbm [resolvable:$true] %s14
      %s16 = sshll.u32 [#allocation2], 4
      %s17 = int_to_ptr.vmem [resolvable:$true] %s16
      %19 = dma.hbm_to_vmem [thread:$0]  %s15, 32, %s17, [#allocation3]
    $region5: #{tpu_custom_call.1} parent=1 // pred_fallthru
      _
    // Predicated region
    $region6: #{tpu_custom_call.1} parent=1 // pred_check
      _
    $region7: #{tpu_custom_call.1} parent=1 // pred_check_branch
      %21 = sbr.rel (0) target = $region9
    $region8: #{tpu_custom_call.1} parent=1 // pred_region
      _
    $region9: #{tpu_custom_call.1} parent=1 // pred_fallthru
      _
    // Predicated region
    $region10: #{tpu_custom_call.1} parent=1 // pred_check
      _
    $region11: #{tpu_custom_call.1} parent=1 // pred_check_branch
      %23 = sbr.rel (0) target = $region13
    $region12: #{tpu_custom_call.1} parent=1 // pred_region
      %25 = dma.done [#allocation3], 32
    $region13: #{tpu_custom_call.1} parent=1 // pred_fallthru
      _
    %v26 = vld [vmem:[#allocation2] sm:$0x3]
    %v27 = vld [vmem:[%s1] sm:$0x3]
    %v28 = vmul.f32 %v26, %v27
    %29 = vst [vmem:[#allocation5] sm:$0x3] %v28
    // Predicated region
    $region14: #{tpu_custom_call.1} parent=1 // pred_check
      _
    $region15: #{tpu_custom_call.1} parent=1 // pred_check_branch
      %31 = sbr.rel (0) target = $region17
    $region16: #{tpu_custom_call.1} parent=1 // pred_region
      %33 = vsyncadd [#allocation4], 0
      %s35 = sshll.u32 [#allocation5], 4
      %s36 = int_to_ptr.vmem [resolvable:$true] %s35
      %s37 = sshll.u32 %s2, 4
      %s38 = int_to_ptr.hbm [resolvable:$true] %s37
      %40 = dma.vmem_to_hbm [thread:$0]  %s36, 32, %s38, [#allocation4]
    $region17: #{tpu_custom_call.1} parent=1 // pred_fallthru
      _
    // Predicated region
    $region18: #{tpu_custom_call.1} parent=1 // pred_check
      _
    $region19: #{tpu_custom_call.1} parent=1 // pred_check_branch
      %42 = sbr.rel (0) target = $region21
    $region20: #{tpu_custom_call.1} parent=1 // pred_region
      %44 = dma.done [#allocation4], 32
    $region21: #{tpu_custom_call.1} parent=1 // pred_fallthru
      _
    %45 = vsyncpa [#allocation3], 1
    %46 = vsyncpa [#allocation4], 1

</llo_original>
